<compile_context>
chip_gen: v6e
topology: v6e:2x2x1
jax: 0.10.0
libtpu: 0.0.40
codegen_flags: <defaults>
</compile_context>

<pallas_src>
import functools

import jax
import jax.numpy as jnp
from jax.experimental import pallas as pl
from jax.experimental.pallas import tpu as pltpu


def _round_up(x, m):
    return ((x + m - 1) // m) * m


def choose_lane_pack(input_dim, n_rows):
    """How many logical rows to fold into the 128-lane axis (lane density)."""
    if input_dim < 128 and 128 % input_dim == 0:
        p = 128 // input_dim
        if n_rows % p == 0:
            return p
    return 1


def pack_highway_params(wg, bg, wl, bl, *, pack=1, matmul_dtype=jnp.bfloat16):
    """One-time parameter packing (hoist out of the forward path).

    wg, wl : (L, D, D) weights in (in, out) layout (PyTorch nn.Linear stores
             (out, in); transpose before calling).
    bg, bl : (L, D) biases.
    pack   : logical rows folded into the 128-lane axis (1 or 128 // D).

    Returns:
      w_packed : (pack*D, 2*L*pack*D), matmul_dtype. Column chunk c (width
                 pack*D) holds chunk-c projections for every packed row group
                 (block-diagonal replication); chunks ordered
                 [gate_0 .. gate_{L-1}, lin_0 .. lin_{L-1}].
      b_packed : (1, 2*L*pack*D), float32.
    """
    L, D, _ = wg.shape
    w_stack = jnp.concatenate([wg, wl], axis=0).astype(matmul_dtype)   # (2L, D, D)
    b_stack = jnp.concatenate([bg, bl], axis=0).astype(jnp.float32)    # (2L, D)

    eye_p = jnp.eye(pack, dtype=matmul_dtype)
    # (2L, pack, D, pack, D): block-diagonal replication across packed row groups.
    w_blk = jnp.einsum("gh,cij->cgihj", eye_p, w_stack)
    w_blk = w_blk.reshape(2 * L, pack * D, pack * D)
    w_packed = jnp.transpose(w_blk, (1, 0, 2)).reshape(pack * D, 2 * L * pack * D)

    b_packed = jnp.tile(b_stack[:, None, :], (1, pack, 1)).reshape(1, 2 * L * pack * D)
    return w_packed, b_packed


def _highway_kernel(x_ref, w_ref, b_ref, o_ref, *, num_layers, lane_width, matmul_dtype):
    # x_ref : (row_tile, LW)        packed input rows (LW = pack*D, lane-dense)
    # w_ref : (LW, 2*L*LW)          packed block-diagonal weights (bf16)
    # b_ref : (1, 2*L*LW)           packed biases (f32)
    # o_ref : (row_tile, LW)        output tile
    L, LW = num_layers, lane_width

    x_in = x_ref[...]
    # Single fused, lane-dense MXU matmul for all gate+linear projections of all
    # layers (bf16 operands, f32 accumulation).
    y = jnp.dot(x_in.astype(matmul_dtype), w_ref[...],
                preferred_element_type=jnp.float32) + b_ref[...]

    curr = x_in.astype(jnp.float32)
    # L is small -> trace-time unroll; per-layer slices keep only y + curr live
    # (no full (row_tile, L*LW) gates / nonlin materialization).
    # TODO(synk): for large L switch to lax.fori_loop(..., unroll=True) to bound
    #             vreg live ranges.
    for layer in range(L):
        g = jax.nn.sigmoid(y[:, layer * LW:(layer + 1) * LW])
        nl = jnp.maximum(y[:, (L + layer) * LW:(L + layer + 1) * LW], 0.0)  # ReLU
        curr = nl + g * (curr - nl)            # == g*curr + (1-g)*nl
    o_ref[...] = curr.astype(o_ref.dtype)


def highway_pallas(x, w_packed, b_packed, *, num_layers, pack=1):
    """Highway forward. x: (..., D); params from pack_highway_params()."""
    orig_shape = x.shape
    D = orig_shape[-1]
    x2 = x.reshape(-1, D)
    N = x2.shape[0]

    LW = w_packed.shape[0]                # pack * D (lane width)
    width = w_packed.shape[1]             # 2 * L * LW
    L = num_layers
    assert LW == pack * D and width == 2 * L * LW and N % pack == 0

    # Fold `pack` logical rows into the 128-wide lane axis (pure metadata reshape).
    n_rows = N // pack
    xp = x2.reshape(n_rows, LW)

    # ---- generation-aware VMEM budget & row tiling ------------------------------
    try:
        vmem_cap = int(pltpu.get_tpu_info().vmem_capacity_bytes)
    except Exception:
        vmem_cap = 64 * 1024 * 1024        # conservative fallback (v7x: 64 MiB/TC)
    budget = int(vmem_cap * 0.75)          # leave Mosaic scoped-scratch headroom

    x_b = jnp.dtype(x.dtype).itemsize
    w_b = jnp.dtype(w_packed.dtype).itemsize
    sub = 8 * max(1, 4 // x_b)             # sublane multiple for x's dtype

    # Weights/bias have a constant index_map (fetched once) but the default
    # pipeliner still allocates them double-buffered -> count 2x.
    # TODO(synk): pipeline_mode=pl.Buffered(1) on the weight spec when D*L is
    #             large enough for that 2x to matter.
    w_total = 2 * (LW * width * w_b + width * 4)
    # per packed row: double-buffered in + out tiles, f32 fused output y,
    # and a generous allowance for f32 working vregs (curr / slices).
    per_row = LW * (2 * x_b + 2 * x_b) + width * 4 + 4 * LW * 4

    row_tile = max(sub, min((budget - w_total) // max(per_row, 1), 4096))
    row_tile = (row_tile // sub) * sub
    if n_rows >= 2 * sub:
        # keep >= 2 grid steps so the "parallel" axis can shard across v7x's 2 TCs
        row_tile = min(row_tile, _round_up(pl.cdiv(n_rows, 2), sub))
    if row_tile >= n_rows:
        row_tile = n_rows                  # single full block (== array dims is legal)

    grid = (pl.cdiv(n_rows, row_tile),)    # ragged final block handled by Pallas
                                           # (no jnp.pad / out[:N] HBM passes)

    footprint = w_total + row_tile * per_row
    vmem_limit = int(min(max(2 * footprint, 32 * 1024 * 1024), int(vmem_cap * 0.85)))

    kernel = functools.partial(_highway_kernel, num_layers=L, lane_width=LW,
                               matmul_dtype=w_packed.dtype)

    out = pl.pallas_call(
        kernel,
        out_shape=jax.ShapeDtypeStruct((n_rows, LW), x.dtype),
        grid_spec=pltpu.PrefetchScalarGridSpec(
            num_scalar_prefetch=0,
            grid=grid,
            in_specs=[
                pl.BlockSpec((row_tile, LW), lambda i: (i, 0)),   # packed input rows
                pl.BlockSpec((LW, width), lambda i: (0, 0)),      # packed weights (resident)
                pl.BlockSpec((1, width), lambda i: (0, 0)),       # packed biases
            ],
            out_specs=pl.BlockSpec((row_tile, LW), lambda i: (i, 0)),
        ),
        compiler_params=pltpu.CompilerParams(
            dimension_semantics=("parallel",),     # row axis shards across TCs (v7x)
            vmem_limit_bytes=vmem_limit,
        ),
    )(xp, w_packed, b_packed)

    return out.reshape(orig_shape)


def highway_ref(x, wg, bg, wl, bl, matmul_dtype=jnp.float32):
    """Pure-JAX reference mirroring the PyTorch forward exactly (ReLU activation).

    Matmul operands are cast to `matmul_dtype` (f32 accumulation) so the
    reference matches the kernel's MXU precision.
    """
    orig_shape = x.shape
    x2 = x.reshape(-1, orig_shape[-1])
    xm = x2.astype(matmul_dtype)
    curr = x2.astype(jnp.float32)
    for layer in range(wg.shape[0]):
        gate = jax.nn.sigmoid(
            jnp.dot(xm, wg[layer].astype(matmul_dtype),
                    preferred_element_type=jnp.float32) + bg[layer])
        nonlinear = jnp.maximum(
            jnp.dot(xm, wl[layer].astype(matmul_dtype),
                    preferred_element_type=jnp.float32) + bl[layer], 0.0)
        curr = gate * curr + (1.0 - gate) * nonlinear
    return curr.astype(x.dtype).reshape(orig_shape)


if __name__ == "__main__":
    # Small shapes: batch=2, seq=8, hidden=32, 2 highway layers.
    B, S, D, L = 2, 8, 32, 2

    key = jax.random.PRNGKey(0)
    kx, kwg, kbg, kwl, kbl = jax.random.split(key, 5)

    x = jax.random.normal(kx, (B, S, D), dtype=jnp.float32)

    # Deterministic parameter init; stored in (in, out) layout
    # (PyTorch nn.Linear stores (out, in) -> transpose before packing).
    scale = 1.0 / jnp.sqrt(jnp.float32(D))
    wg = jax.random.uniform(kwg, (L, D, D), jnp.float32, -scale, scale)
    bg = jax.random.uniform(kbg, (L, D), jnp.float32, -scale, scale)
    wl = jax.random.uniform(kwl, (L, D, D), jnp.float32, -scale, scale)
    bl = jax.random.uniform(kbl, (L, D), jnp.float32, -scale, scale)

    N = B * S
    pack = choose_lane_pack(D, N)          # D=32 -> pack 4 rows into the 128 lanes

    # One-time parameter packing (hoisted out of the forward path).
    w_packed, b_packed = pack_highway_params(wg, bg, wl, bl, pack=pack,
                                             matmul_dtype=jnp.bfloat16)

    out = highway_pallas(x, w_packed, b_packed, num_layers=L, pack=pack)
    out = jax.block_until_ready(out)

    ref = highway_ref(x, wg, bg, wl, bl, matmul_dtype=jnp.bfloat16)
    assert out.shape == x.shape
    assert jnp.allclose(out, ref, atol=5e-3, rtol=5e-3), (
        f"Pallas kernel mismatch vs reference; max abs diff "
        f"{float(jnp.max(jnp.abs(out - ref)))}")

    print("KERNEL_OK")
</pallas_src>

<mosaic_0001>
module attributes {stable_mosaic.version = 11 : i64} {
  func.func @_highway_kernel(%arg0: i32, %arg1: memref<4x128xf32, #tpu.memory_space<vmem>>, %arg2: memref<128x512xbf16, #tpu.memory_space<vmem>>, %arg3: memref<1x512xf32, #tpu.memory_space<vmem>>, %arg4: memref<4x128xf32, #tpu.memory_space<vmem>>) attributes {dimension_semantics = [#tpu.dimension_semantics<parallel>], iteration_bounds = array<i64: 1>, scalar_prefetch = 0 : i64, scratch_operands = 0 : i64, tpu.core_type = #tpu.core_type<tc>, window_params = [{transform_indices = @transform_0, window_bounds = array<i64: 4, 128>}, {pipeline_mode = #tpu.pipeline_mode<synchronous>, transform_indices = @transform_1, window_bounds = array<i64: 128, 512>}, {pipeline_mode = #tpu.pipeline_mode<synchronous>, transform_indices = @transform_2, window_bounds = array<i64: 1, 512>}, {transform_indices = @transform_3, window_bounds = array<i64: 4, 128>}]} {
    %c0 = arith.constant 0 : index
    %c0_0 = arith.constant 0 : index
    %0 = vector.load %arg1[%c0, %c0_0] : memref<4x128xf32, #tpu.memory_space<vmem>>, vector<4x128xf32>
    %1 = arith.truncf %0 : vector<4x128xf32> to vector<4x128xbf16>
    %c0_1 = arith.constant 0 : index
    %c0_2 = arith.constant 0 : index
    %2 = vector.load %arg2[%c0_1, %c0_2] : memref<128x512xbf16, #tpu.memory_space<vmem>>, vector<128x512xbf16>
    %cst = arith.constant dense<0.000000e+00> : vector<4x512xf32>
    %3 = tpu.matmul %1, %2, %cst {dimension_numbers = #tpu.dot_dimension_numbers<[1], [0], [0], [1], [0, 0, 1, 1], [], []>} : vector<4x128xbf16>, vector<128x512xbf16>, vector<4x512xf32> -> vector<4x512xf32>
    %c0_3 = arith.constant 0 : index
    %c0_4 = arith.constant 0 : index
    %4 = vector.load %arg3[%c0_3, %c0_4] : memref<1x512xf32, #tpu.memory_space<vmem>>, vector<1x512xf32>
    %5 = vector.broadcast %4 : vector<1x512xf32> to vector<4x512xf32>
    %6 = arith.addf %3, %5 : vector<4x512xf32>
    %7 = vector.extract_strided_slice %6 {offsets = [0, 0], sizes = [4, 128], strides = [1, 1]} : vector<4x512xf32> to vector<4x128xf32>
    %8 = arith.negf %7 : vector<4x128xf32>
    %9 = math.exp %8 : vector<4x128xf32>
    %cst_5 = arith.constant 1.000000e+00 : f32
    %10 = vector.broadcast %cst_5 : f32 to vector<4x128xf32>
    %11 = arith.addf %10, %9 : vector<4x128xf32>
    %12 = arith.divf %10, %11 : vector<4x128xf32>
    %13 = vector.extract_strided_slice %6 {offsets = [0, 256], sizes = [4, 128], strides = [1, 1]} : vector<4x512xf32> to vector<4x128xf32>
    %cst_6 = arith.constant 0.000000e+00 : f32
    %14 = vector.broadcast %cst_6 : f32 to vector<4x128xf32>
    %15 = arith.maximumf %13, %14 : vector<4x128xf32>
    %16 = arith.subf %0, %15 : vector<4x128xf32>
    %17 = arith.mulf %12, %16 : vector<4x128xf32>
    %18 = arith.addf %15, %17 : vector<4x128xf32>
    %19 = vector.extract_strided_slice %6 {offsets = [0, 128], sizes = [4, 128], strides = [1, 1]} : vector<4x512xf32> to vector<4x128xf32>
    %20 = arith.negf %19 : vector<4x128xf32>
    %21 = math.exp %20 : vector<4x128xf32>
    %cst_7 = arith.constant 1.000000e+00 : f32
    %22 = vector.broadcast %cst_7 : f32 to vector<4x128xf32>
    %23 = arith.addf %22, %21 : vector<4x128xf32>
    %24 = arith.divf %22, %23 : vector<4x128xf32>
    %25 = vector.extract_strided_slice %6 {offsets = [0, 384], sizes = [4, 128], strides = [1, 1]} : vector<4x512xf32> to vector<4x128xf32>
    %cst_8 = arith.constant 0.000000e+00 : f32
    %26 = vector.broadcast %cst_8 : f32 to vector<4x128xf32>
    %27 = arith.maximumf %25, %26 : vector<4x128xf32>
    %28 = arith.subf %18, %27 : vector<4x128xf32>
    %29 = arith.mulf %24, %28 : vector<4x128xf32>
    %30 = arith.addf %27, %29 : vector<4x128xf32>
    %c0_9 = arith.constant 0 : index
    %c0_10 = arith.constant 0 : index
    %31 = vector.load %arg4[%c0_9, %c0_10] : memref<4x128xf32, #tpu.memory_space<vmem>>, vector<4x128xf32>
    tpu.vector_store %arg4[%c0_9, %c0_10], %30 {strides = array<i32>} : memref<4x128xf32, #tpu.memory_space<vmem>>, vector<4x128xf32>,
    return
  }
  func.func @transform_0(%arg0: i32) -> (i32, i32) {
    %c0_i32 = arith.constant 0 : i32
    %c0_i32_0 = arith.constant 0 : i32
    return %arg0, %c0_i32 : i32, i32
  }
  func.func @transform_1(%arg0: i32) -> (i32, i32) {
    %c0_i32 = arith.constant 0 : i32
    %c0_i32_0 = arith.constant 0 : i32
    %c0_i32_1 = arith.constant 0 : i32
    return %c0_i32, %c0_i32_0 : i32, i32
  }
  func.func @transform_2(%arg0: i32) -> (i32, i32) {
    %c0_i32 = arith.constant 0 : i32
    %c0_i32_0 = arith.constant 0 : i32
    %c0_i32_1 = arith.constant 0 : i32
    return %c0_i32, %c0_i32_0 : i32, i32
  }
  func.func @transform_3(%arg0: i32) -> (i32, i32) {
    %c0_i32 = arith.constant 0 : i32
    %c0_i32_0 = arith.constant 0 : i32
    return %arg0, %c0_i32 : i32, i32
  }
}

</mosaic_0001>

<llo_original>
// kernel: tpu_custom_call.1
$region0: #{tpu_custom_call.1}
  #allocation0 [shape = 'u32[]', space=smem, size = 0x4, offset = 0x4, fixed_abs, tag = 'smem constant byte address 0x4 - core index']
  #allocation1 [shape = 'u32[144,128]{1,0:T(1,128)}', space=vmem, size = 0x12000, scoped, tag = 'internal scratch']
  %s0 = inlined_call_operand.hbm [shape: f32[4,128], index: 0, kind: input, shape index: {}]
  %s1 = inlined_call_operand.hbm [shape: bf16[128,512], index: 1, kind: input, shape index: {}]
  %s2 = inlined_call_operand.hbm [shape: f32[1,512], index: 2, kind: input, shape index: {}]
  %s3 = inlined_call_operand.hbm [shape: f32[4,128], index: 3, kind: output, shape index: {}]
  %s4 = sld [smem:[#allocation0]]
  $region34: #{tpu_custom_call.1} parent=0
    _
  %s6 = ssub.s32 1, %s4
  %s7 = scalar_select 0, %s6, %s4
  $region1: #{tpu_custom_call.1} parent=0
    #allocation2 [shape = 'u8[2048]{0}', space=vmem, size = 0x800, scoped, tag = 'input window, operand 0, single buffered']
    #allocation3 [shape = 's32[1]{0}', space=sflag, size = 0x4, scoped, tag = 'scoped memory for tpu_custom_call.1']
    #allocation4 [shape = 's32[1]{0}', space=sflag, size = 0x4, scoped, tag = 'scoped memory for tpu_custom_call.1']
    #allocation5 [shape = 'u8[131072]{0}', space=vmem, size = 0x20000, scoped, tag = 'input window, operand 1, single buffered']
    #allocation6 [shape = 's32[1]{0}', space=sflag, size = 0x4, scoped, tag = 'scoped memory for tpu_custom_call.1']
    #allocation7 [shape = 'u8[2048]{0}', space=vmem, size = 0x800, scoped, tag = 'input window, operand 2, single buffered']
    #allocation8 [shape = 'u8[2048]{0}', space=vmem, size = 0x800, scoped, tag = 'output window, operand 0, single buffered']
    %8 = vsyncpa [#allocation3], 0
    %9 = vsyncpa [#allocation6], 0
    %10 = vsyncpa [#allocation4], 0
    // Predicated region
    $region2: #{tpu_custom_call.1} parent=1 // pred_check
      _
    $region3: #{tpu_custom_call.1} parent=1 // pred_check_branch
      %12 = sbr.rel (0) target = $region5
    $region4: #{tpu_custom_call.1} parent=1 // pred_region
      %s14 = ssub.s32 64, 64
      %15 = vsyncadd [#allocation3], %s14
      %s17 = sshll.u32 [#allocation2], 4
      %s18 = int_to_ptr.vmem [resolvable:$true] %s17
      %20 = dma.hbm_to_vmem [thread:$0]  %s0, 64, %s18, [#allocation3]
    $region5: #{tpu_custom_call.1} parent=1 // pred_fallthru
      _
    // Predicated region
    $region6: #{tpu_custom_call.1} parent=1 // pred_check
      _
    $region7: #{tpu_custom_call.1} parent=1 // pred_check_branch
      %22 = sbr.rel (0) target = $region9
    $region8: #{tpu_custom_call.1} parent=1 // pred_region
      %s24 = ssub.s32 4096, 4096
      %25 = vsyncadd [#allocation6], %s24
      %s26 = sshll.u32 [#allocation5], 4
      %s27 = int_to_ptr.vmem [resolvable:$true] %s26
      %32 = dma.hbm_to_vmem [thread:$0]  %s1, 4096, %s27, [#allocation6], 256, 256, 16
    $region9: #{tpu_custom_call.1} parent=1 // pred_fallthru
      _
    // Predicated region
    $region10: #{tpu_custom_call.1} parent=1 // pred_check
      _
    $region11: #{tpu_custom_call.1} parent=1 // pred_check_branch
      %34 = sbr.rel (0) target = $region13
    $region12: #{tpu_custom_call.1} parent=1 // pred_region
      %s36 = ssub.s32 64, 64
      %37 = vsyncadd [#allocation6], %s36
      %s39 = sshll.u32 [#allocation7], 4
      %s40 = int_to_ptr.vmem [resolvable:$true] %s39
      %42 = dma.hbm_to_vmem [thread:$0]  %s2, 64, %s40, [#allocation6]
    $region13: #{tpu_custom_call.1} parent=1 // pred_fallthru
      _
    // Predicated region
    $region14: #{tpu_custom_call.1} parent=1 // pred_check
      _
    $region15: #{tpu_custom_call.1} parent=1 // pred_check_branch
      %44 = sbr.rel (0) target = $region17
    $region16: #{tpu_custom_call.1} parent=1 // pred_region
      %45 = dma.done [#allocation3], 64
    $region17: #{tpu_custom_call.1} parent=1 // pred_fallthru
      _
    // Predicated region
    $region18: #{tpu_custom_call.1} parent=1 // pred_check
      _
    $region19: #{tpu_custom_call.1} parent=1 // pred_check_branch
      %47 = sbr.rel (0) target = $region21
    $region20: #{tpu_custom_call.1} parent=1 // pred_region
      %48 = dma.done [#allocation6], 4096
    $region21: #{tpu_custom_call.1} parent=1 // pred_fallthru
      _
    // Predicated region
    $region22: #{tpu_custom_call.1} parent=1 // pred_check
      _
    $region23: #{tpu_custom_call.1} parent=1 // pred_check_branch
      %50 = sbr.rel (0) target = $region25
    $region24: #{tpu_custom_call.1} parent=1 // pred_region
      %51 = dma.done [#allocation6], 64
    $region25: #{tpu_custom_call.1} parent=1 // pred_fallthru
      _
    %v53 = vld [vmem:[#allocation2] sm:$0xf]
    %v54 = vpack.c.bf16 %v53, %v53
    %v55 = vld [vmem:[#allocation5] sm:$0xff]
    %v56 = vld [vmem:[#allocation5 + $0x8] sm:$0xff]
    %v57 = vld [vmem:[#allocation5 + $0x10] sm:$0xff]
    %v58 = vld [vmem:[#allocation5 + $0x18] sm:$0xff]
    %v59 = vld [vmem:[#allocation5 + $0x20] sm:$0xff]
    %v60 = vld [vmem:[#allocation5 + $0x28] sm:$0xff]
    %v61 = vld [vmem:[#allocation5 + $0x30] sm:$0xff]
    %v62 = vld [vmem:[#allocation5 + $0x38] sm:$0xff]
    %v63 = vld [vmem:[#allocation5 + $0x40] sm:$0xff]
    %v64 = vld [vmem:[#allocation5 + $0x48] sm:$0xff]
    %v65 = vld [vmem:[#allocation5 + $0x50] sm:$0xff]
    %v66 = vld [vmem:[#allocation5 + $0x58] sm:$0xff]
    %v67 = vld [vmem:[#allocation5 + $0x60] sm:$0xff]
    %v68 = vld [vmem:[#allocation5 + $0x68] sm:$0xff]
    %v69 = vld [vmem:[#allocation5 + $0x70] sm:$0xff]
    %v70 = vld [vmem:[#allocation5 + $0x78] sm:$0xff]
    %v71 = vld [vmem:[#allocation5 + $0x80] sm:$0xff]
    %v72 = vld [vmem:[#allocation5 + $0x88] sm:$0xff]
    %v73 = vld [vmem:[#allocation5 + $0x90] sm:$0xff]
    %v74 = vld [vmem:[#allocation5 + $0x98] sm:$0xff]
    %v75 = vld [vmem:[#allocation5 + $0xa0] sm:$0xff]
    %v76 = vld [vmem:[#allocation5 + $0xa8] sm:$0xff]
    %v77 = vld [vmem:[#allocation5 + $0xb0] sm:$0xff]
    %v78 = vld [vmem:[#allocation5 + $0xb8] sm:$0xff]
    %v79 = vld [vmem:[#allocation5 + $0xc0] sm:$0xff]
    %v80 = vld [vmem:[#allocation5 + $0xc8] sm:$0xff]
    %v81 = vld [vmem:[#allocation5 + $0xd0] sm:$0xff]
    %v82 = vld [vmem:[#allocation5 + $0xd8] sm:$0xff]
    %v83 = vld [vmem:[#allocation5 + $0xe0] sm:$0xff]
    %v84 = vld [vmem:[#allocation5 + $0xe8] sm:$0xff]
    %v85 = vld [vmem:[#allocation5 + $0xf0] sm:$0xff]
    %v86 = vld [vmem:[#allocation5 + $0xf8] sm:$0xff]
    %v87 = vld [vmem:[#allocation7] sm:$0xf]
    %v89 = vlaneseq
    %v90 = vshrl.u32 %v89, 7
    %v91 = vsub.s32 0, %v90
    %v92 = vrot.slane %v87, %v91
    %v93 = vlaneseq
    %v94 = vshrl.u32 %v93, 7
    %v95 = vsub.s32 1, %v94
    %v96 = vrot.slane %v87, %v95
    %v97 = vlaneseq
    %v98 = vshrl.u32 %v97, 7
    %v99 = vsub.s32 2, %v98
    %v100 = vrot.slane %v87, %v99
    %v101 = vlaneseq
    %v102 = vshrl.u32 %v101, 7
    %v103 = vsub.s32 3, %v102
    %v104 = vrot.slane %v87, %v103
    %v141 = vunpack.c.l.b16 %v55
    %v142 = vunpack.c.h.b16 %v55
    %v143 = vunpack.c.l.b16 %v56
    %v144 = vunpack.c.h.b16 %v56
    %v145 = vunpack.c.l.b16 %v57
    %v146 = vunpack.c.h.b16 %v57
    %v147 = vunpack.c.l.b16 %v58
    %v148 = vunpack.c.h.b16 %v58
    %v149 = vunpack.c.l.b16 %v59
    %v150 = vunpack.c.h.b16 %v59
    %v151 = vunpack.c.l.b16 %v60
    %v152 = vunpack.c.h.b16 %v60
    %v153 = vunpack.c.l.b16 %v61
    %v154 = vunpack.c.h.b16 %v61
    %v155 = vunpack.c.l.b16 %v62
    %v156 = vunpack.c.h.b16 %v62
    %v157 = vunpack.c.l.b16 %v63
    %v158 = vunpack.c.h.b16 %v63
    %v159 = vunpack.c.l.b16 %v64
    %v160 = vunpack.c.h.b16 %v64
    %v161 = vunpack.c.l.b16 %v65
    %v162 = vunpack.c.h.b16 %v65
    %v163 = vunpack.c.l.b16 %v66
    %v164 = vunpack.c.h.b16 %v66
    %v165 = vunpack.c.l.b16 %v67
    %v166 = vunpack.c.h.b16 %v67
    %v167 = vunpack.c.l.b16 %v68
    %v168 = vunpack.c.h.b16 %v68
    %v169 = vunpack.c.l.b16 %v69
    %v170 = vunpack.c.h.b16 %v69
    %v171 = vunpack.c.l.b16 %v70
    %v172 = vunpack.c.h.b16 %v70
    %v173 = vunpack.c.l.b16 %v71
    %v174 = vunpack.c.h.b16 %v71
    %v175 = vunpack.c.l.b16 %v72
    %v176 = vunpack.c.h.b16 %v72
    %v177 = vunpack.c.l.b16 %v73
    %v178 = vunpack.c.h.b16 %v73
    %v179 = vunpack.c.l.b16 %v74
    %v180 = vunpack.c.h.b16 %v74
    %v181 = vunpack.c.l.b16 %v75
    %v182 = vunpack.c.h.b16 %v75
    %v183 = vunpack.c.l.b16 %v76
    %v184 = vunpack.c.h.b16 %v76
    %v185 = vunpack.c.l.b16 %v77
    %v186 = vunpack.c.h.b16 %v77
    %v187 = vunpack.c.l.b16 %v78
    %v188 = vunpack.c.h.b16 %v78
    %v189 = vunpack.c.l.b16 %v79
    %v190 = vunpack.c.h.b16 %v79
    %v191 = vunpack.c.l.b16 %v80
    %v192 = vunpack.c.h.b16 %v80
    %v193 = vunpack.c.l.b16 %v81
    %v194 = vunpack.c.h.b16 %v81
    %v195 = vunpack.c.l.b16 %v82
    %v196 = vunpack.c.h.b16 %v82
    %v197 = vunpack.c.l.b16 %v83
    %v198 = vunpack.c.h.b16 %v83
    %v199 = vunpack.c.l.b16 %v84
    %v200 = vunpack.c.h.b16 %v84
    %v201 = vunpack.c.l.b16 %v85
    %v202 = vunpack.c.h.b16 %v85
    %v203 = vunpack.c.l.b16 %v86
    %v204 = vunpack.c.h.b16 %v86
    %v205 = vpack.c.b16 %v145, %v141
    %v206 = vpack.c.b16 %v146, %v142
    %v207 = vpack.c.b16 %v147, %v143
    %v208 = vpack.c.b16 %v148, %v144
    %v209 = vpack.c.b16 %v153, %v149
    %v210 = vpack.c.b16 %v154, %v150
    %v211 = vpack.c.b16 %v155, %v151
    %v212 = vpack.c.b16 %v156, %v152
    %v213 = vpack.c.b16 %v161, %v157
    %v214 = vpack.c.b16 %v162, %v158
    %v215 = vpack.c.b16 %v163, %v159
    %v216 = vpack.c.b16 %v164, %v160
    %v217 = vpack.c.b16 %v169, %v165
    %v218 = vpack.c.b16 %v170, %v166
    %v219 = vpack.c.b16 %v171, %v167
    %v220 = vpack.c.b16 %v172, %v168
    %v221 = vpack.c.b16 %v177, %v173
    %v222 = vpack.c.b16 %v178, %v174
    %v223 = vpack.c.b16 %v179, %v175
    %v224 = vpack.c.b16 %v180, %v176
    %v225 = vpack.c.b16 %v185, %v181
    %v226 = vpack.c.b16 %v186, %v182
    %v227 = vpack.c.b16 %v187, %v183
    %v228 = vpack.c.b16 %v188, %v184
    %v229 = vpack.c.b16 %v193, %v189
    %v230 = vpack.c.b16 %v194, %v190
    %v231 = vpack.c.b16 %v195, %v191
    %v232 = vpack.c.b16 %v196, %v192
    %v233 = vpack.c.b16 %v201, %v197
    %v234 = vpack.c.b16 %v202, %v198
    %v235 = vpack.c.b16 %v203, %v199
    %v236 = vpack.c.b16 %v204, %v200
    %269 = vmatprep.subr.bf16.mxu0 %v234
    %270 = vmatpush1.bf16.msra.mxu0 %v233
    %271 = vmatprep.subr.bf16.mxu0 %v230
    %272 = vmatpush1.bf16.msra.mxu0 %v229
    %273 = vmatprep.subr.bf16.mxu0 %v226
    %274 = vmatpush1.bf16.msra.mxu0 %v225
    %275 = vmatprep.subr.bf16.mxu0 %v222
    %276 = vmatpush1.bf16.msra.mxu0 %v221
    %277 = vmatprep.subr.bf16.mxu0 %v218
    %278 = vmatpush1.bf16.msra.mxu0 %v217
    %279 = vmatprep.subr.bf16.mxu0 %v214
    %280 = vmatpush1.bf16.msra.mxu0 %v213
    %281 = vmatprep.subr.bf16.mxu0 %v210
    %282 = vmatpush1.bf16.msra.mxu0 %v209
    %283 = vmatprep.subr.bf16.mxu0 %v206
    %284 = vmatpush1.bf16.msra.mxu0 %v205
    %285 = vmatprep.subr.bf16.mxu0 0
    %286 = vmatpush2.bf16.msra.mxu0 0
    %287 = vmatprep.subr.bf16.mxu0 0
    %288 = vmatpush2.bf16.msra.mxu0 0
    %289 = vmatprep.subr.bf16.mxu0 0
    %290 = vmatpush2.bf16.msra.mxu0 0
    %291 = vmatprep.subr.bf16.mxu0 0
    %292 = vmatpush2.bf16.msra.mxu0 0
    %293 = vmatprep.subr.bf16.mxu0 0
    %294 = vmatpush2.bf16.msra.mxu0 0
    %295 = vmatprep.subr.bf16.mxu0 0
    %296 = vmatpush2.bf16.msra.mxu0 0
    %297 = vmatprep.subr.bf16.mxu0 0
    %298 = vmatpush2.bf16.msra.mxu0 0
    %299 = vmatprep.subr.bf16.mxu0 0
    %300 = vmatpush2.bf16.msra.mxu0 0
    %301 = vmatprep.mubr.bf16.mxu0 0
    %302 = vmatmul.mubr.bf16.gmra.mxu0 %v54
    %v303 = vpop.f32.mrf.mxu0
    %v304 = vadd.f32 %v92, %v303
    %v305 = vpop.f32.mrf.mxu0
    %v306 = vadd.f32 %v96, %v305
    %v307 = vpop.f32.mrf.mxu0
    %v308 = vpop.f32.mrf.mxu0
    %309 = vdwg.mxu0
    %310 = vmatprep.subr.bf16.mxu0 %v236
    %311 = vmatpush1.bf16.msra.mxu0 %v235
    %312 = vmatprep.subr.bf16.mxu0 %v232
    %313 = vmatpush1.bf16.msra.mxu0 %v231
    %314 = vmatprep.subr.bf16.mxu0 %v228
    %315 = vmatpush1.bf16.msra.mxu0 %v227
    %316 = vmatprep.subr.bf16.mxu0 %v224
    %317 = vmatpush1.bf16.msra.mxu0 %v223
    %318 = vmatprep.subr.bf16.mxu0 %v220
    %319 = vmatpush1.bf16.msra.mxu0 %v219
    %320 = vmatprep.subr.bf16.mxu0 %v216
    %321 = vmatpush1.bf16.msra.mxu0 %v215
    %322 = vmatprep.subr.bf16.mxu0 %v212
    %323 = vmatpush1.bf16.msra.mxu0 %v211
    %324 = vmatprep.subr.bf16.mxu0 %v208
    %325 = vmatpush1.bf16.msra.mxu0 %v207
    %326 = vmatprep.subr.bf16.mxu0 0
    %327 = vmatpush2.bf16.msra.mxu0 0
    %328 = vmatprep.subr.bf16.mxu0 0
    %329 = vmatpush2.bf16.msra.mxu0 0
    %330 = vmatprep.subr.bf16.mxu0 0
    %331 = vmatpush2.bf16.msra.mxu0 0
    %332 = vmatprep.subr.bf16.mxu0 0
    %333 = vmatpush2.bf16.msra.mxu0 0
    %334 = vmatprep.subr.bf16.mxu0 0
    %335 = vmatpush2.bf16.msra.mxu0 0
    %336 = vmatprep.subr.bf16.mxu0 0
    %337 = vmatpush2.bf16.msra.mxu0 0
    %338 = vmatprep.subr.bf16.mxu0 0
    %339 = vmatpush2.bf16.msra.mxu0 0
    %340 = vmatprep.subr.bf16.mxu0 0
    %341 = vmatpush2.bf16.msra.mxu0 0
    %342 = vmatprep.mubr.bf16.mxu0 0
    %343 = vmatmul.mubr.bf16.gmra.mxu0 %v54
    %v344 = vpop.f32.mrf.mxu0
    %v345 = vadd.f32 %v100, %v344
    %v346 = vpop.f32.mrf.mxu0
    %v347 = vadd.f32 %v104, %v346
    %v348 = vpop.f32.mrf.mxu0
    %v349 = vpop.f32.mrf.mxu0
    %350 = vdwg.mxu0
    %v351 = vxor.u32 %v304, 2147483648
    %v352 = vmul.f32 %v351, 1.442695
    %v353 = vpow.pop %v352
    %v354 = vadd.f32 %v353, 1.0
    %v355 = vrcp.pop %v354
    %v356 = vmul.f32 1.0, %v355
    %v357 = vmax.f32 %v345, 0.0
    %v358 = vsub.f32 %v53, %v357
    %v359 = vmul.f32 %v356, %v358
    %v360 = vadd.f32 %v357, %v359
    %v361 = vxor.u32 %v306, 2147483648
    %v362 = vmul.f32 %v361, 1.442695
    %v363 = vpow.pop %v362
    %v364 = vadd.f32 %v363, 1.0
    %v365 = vrcp.pop %v364
    %v366 = vmul.f32 1.0, %v365
    %v367 = vmax.f32 %v347, 0.0
    %v368 = vsub.f32 %v360, %v367
    %v369 = vmul.f32 %v366, %v368
    %v370 = vadd.f32 %v367, %v369
    %371 = vst [vmem:[#allocation8] sm:$0xf] %v370
    // Predicated region
    $region26: #{tpu_custom_call.1} parent=1 // pred_check
      _
    $region27: #{tpu_custom_call.1} parent=1 // pred_check_branch
      %373 = sbr.rel (0) target = $region29
    $region28: #{tpu_custom_call.1} parent=1 // pred_region
      %s375 = ssub.s32 64, 64
      %376 = vsyncadd [#allocation4], %s375
      %s378 = sshll.u32 [#allocation8], 4
      %s379 = int_to_ptr.vmem [resolvable:$true] %s378
      %381 = dma.vmem_to_hbm [thread:$0]  %s379, 64, %s3, [#allocation4]
    $region29: #{tpu_custom_call.1} parent=1 // pred_fallthru
      _
    // Predicated region
    $region30: #{tpu_custom_call.1} parent=1 // pred_check
      _
    $region31: #{tpu_custom_call.1} parent=1 // pred_check_branch
      %383 = sbr.rel (0) target = $region33
    $region32: #{tpu_custom_call.1} parent=1 // pred_region
      %384 = dma.done [#allocation4], 64
    $region33: #{tpu_custom_call.1} parent=1 // pred_fallthru
      _
    %385 = vsyncpa [#allocation3], 1
    %386 = vsyncpa [#allocation6], 1
    %387 = vsyncpa [#allocation4], 1

</llo_original>
